<compile_context>
chip_gen: v5e
topology: v5e:2x2
jax: 0.10.0
libtpu: 0.0.40
codegen_flags: <defaults>
</compile_context>

<pallas_src>
import functools

import jax
import jax.numpy as jnp
from jax.experimental import pallas as pl
from jax.experimental.pallas import tpu as pltpu

LANE = 128
SUBLANE = 8


# ---------------------------------------------------------------------------
# Hardware introspection (best effort, guarded; only affects performance)
# ---------------------------------------------------------------------------
def _vmem_budget():
    """Return (target_block_bytes, vmem_limit_bytes) from VMEM capacity."""
    cap = None
    try:
        cap = getattr(pltpu.get_tpu_info(), "vmem_capacity_bytes", None)
    except Exception:
        cap = None
    if cap is not None and cap >= 100 * 1024 * 1024:       # v5e / v6e: 128 MiB VMEM
        return 4 * 1024 * 1024, 64 * 1024 * 1024
    return 2 * 1024 * 1024, 32 * 1024 * 1024               # v7x (64 MiB) / unknown


def _num_tensorcores():
    """2 for chips whose Pallas device spans two TensorCores (v4/v5p/v7x)."""
    try:
        kind = jax.devices()[0].device_kind.lower()
    except Exception:
        return 1
    if "lite" in kind or "v5e" in kind or "v6e" in kind:
        return 1
    if "v4" in kind or "v5p" in kind or "v7" in kind or "7x" in kind:
        return 2
    return 1


# ---------------------------------------------------------------------------
# Kernels
# ---------------------------------------------------------------------------
def _mrl_reduce_kernel(x1_ref, x2_ref, t_ref, out_ref, acc_ref, *,
                       margin, valid_rows, row_tile, n_steps):
    """Elementwise margin-ranking loss + sum reduction.

    Grid: (n_parallel, n_steps).  Axis 0 is 'parallel' (TensorCore split),
    axis 1 is the 'arbitrary' reduction axis.  acc_ref is a block-shaped f32
    VMEM accumulator, so the per-step work is pure VPU; the single cross-row
    reduce happens once at the last step.  Rows >= valid_rows (partial last
    block / clamped duplicate block) are masked out in-kernel.
    """
    p = pl.program_id(0)
    s = pl.program_id(1)

    @pl.when(s == 0)
    def _():
        acc_ref[...] = jnp.zeros_like(acc_ref)

    x1 = x1_ref[...].astype(jnp.float32)
    x2 = x2_ref[...].astype(jnp.float32)
    t = t_ref[...].astype(jnp.float32)
    loss = jnp.maximum(margin - t * (x1 - x2), 0.0)

    row0 = (p * n_steps + s) * row_tile          # logical global row of block start
    block_is_full = row0 + row_tile <= valid_rows

    @pl.when(block_is_full)
    def _():
        acc_ref[...] += loss

    @pl.when(jnp.logical_not(block_is_full))
    def _():
        grow = row0 + jax.lax.broadcasted_iota(jnp.int32, loss.shape, 0)
        acc_ref[...] += jnp.where(grow < valid_rows, loss, 0.0)

    @pl.when(s == pl.num_programs(1) - 1)
    def _():
        # Lane-dense (1, 1, cols) partial sum; final tiny reduce in the wrapper.
        out_ref[...] = jnp.sum(acc_ref[...], axis=0).reshape(1, 1, -1)


def _mrl_elementwise_kernel(x1_ref, x2_ref, t_ref, out_ref, *, margin):
    """Elementwise margin-ranking loss, no reduction (dtype-preserving)."""
    x1 = x1_ref[...].astype(jnp.float32)
    x2 = x2_ref[...].astype(jnp.float32)
    t = t_ref[...].astype(jnp.float32)
    out_ref[...] = jnp.maximum(margin - t * (x1 - x2), 0.0).astype(out_ref.dtype)


# ---------------------------------------------------------------------------
# Layout helpers
# ---------------------------------------------------------------------------
def _choose_layout(n, target_block_bytes):
    """Pick (cols, rows, row_tile, needs_pad) for a flattened input of n elems."""
    cols = None
    for c in (512, 256, 128):          # lane-dense widths with a copy-free reshape
        if n % c == 0:
            cols = c
            break
    needs_pad = cols is None
    if needs_pad:                      # ragged tail: pad < 128 elements
        cols = LANE
    rows = pl.cdiv(n, cols)
    max_rows = max(SUBLANE,
                   (target_block_bytes // (cols * 4)) // SUBLANE * SUBLANE)
    row_tile = rows if rows <= max_rows else max_rows
    return cols, rows, row_tile, needs_pad


def _maybe_pad(flat, total, pad_value):
    n = flat.shape[0]
    if total > n:
        flat = jnp.pad(flat, (0, total - n), constant_values=pad_value)
    return flat


# ---------------------------------------------------------------------------
# Wrapper
# ---------------------------------------------------------------------------
def margin_ranking_loss(x1, x2, target, *, margin=0.0, reduction="mean"):
    """Pallas-TPU implementation of CustomMarginRankingLoss.forward.

    Accepts arbitrary (matching) input shapes.  Returns a scalar for
    'mean'/'sum' and an array of the original shape / promoted dtype for
    'none'.
    """
    assert x1.shape == x2.shape == target.shape, "inputs must have equal shapes"
    orig_shape = x1.shape
    out_dtype = jnp.result_type(x1.dtype, x2.dtype, target.dtype)

    x1f, x2f, tf = jnp.ravel(x1), jnp.ravel(x2), jnp.ravel(target)
    n = int(x1f.shape[0])
    if n == 0:
        if reduction == "mean":
            return jnp.array(jnp.nan, dtype=out_dtype)   # matches torch mean over empty
        if reduction == "sum":
            return jnp.array(0.0, dtype=out_dtype)
        return jnp.zeros(orig_shape, dtype=out_dtype)

    target_block_bytes, vmem_limit = _vmem_budget()
    cols, rows, row_tile, needs_pad = _choose_layout(n, target_block_bytes)

    if needs_pad:
        # Ragged tail (< 128 elements): pad with values whose loss is exactly 0
        #   (target=1, x2=0, x1=|margin|+1  =>  margin - (|margin|+1) <= -1 -> 0).
        total = rows * cols
        x1p = _maybe_pad(x1f, total, abs(float(margin)) + 1.0).reshape(rows, cols)
        x2p = _maybe_pad(x2f, total, 0.0).reshape(rows, cols)
        tp = _maybe_pad(tf, total, 1.0).reshape(rows, cols)
    else:
        # Copy-free reshape: n is an exact multiple of cols.
        x1p = x1f.reshape(rows, cols)
        x2p = x2f.reshape(rows, cols)
        tp = tf.reshape(rows, cols)

    n_tiles = pl.cdiv(rows, row_tile)
    in_bytes = n * (x1p.dtype.itemsize + x2p.dtype.itemsize + tp.dtype.itemsize)

    if reduction in ("mean", "sum"):
        # Split the HBM stream across both TensorCores only where two exist.
        n_parallel = 2 if (_num_tensorcores() >= 2 and n_tiles >= 2) else 1
        n_steps = pl.cdiv(n_tiles, n_parallel)

        if n_parallel * n_steps == n_tiles:
            in_idx = lambda p, s: (p * n_steps + s, 0)
        else:
            # Odd tile count on a 2-TensorCore part: the single extra grid step
            # re-reads the last in-bounds block; the kernel's row mask zeroes it.
            in_idx = lambda p, s: (jnp.minimum(p * n_steps + s, n_tiles - 1), 0)

        kernel = functools.partial(
            _mrl_reduce_kernel, margin=float(margin),
            valid_rows=rows, row_tile=row_tile, n_steps=n_steps)

        partials = pl.pallas_call(
            kernel,
            out_shape=jax.ShapeDtypeStruct((n_parallel, 1, cols), jnp.float32),
            grid_spec=pltpu.PrefetchScalarGridSpec(
                num_scalar_prefetch=0,
                grid=(n_parallel, n_steps),
                in_specs=[
                    pl.BlockSpec((row_tile, cols), in_idx),
                    pl.BlockSpec((row_tile, cols), in_idx),
                    pl.BlockSpec((row_tile, cols), in_idx),
                ],
                out_specs=pl.BlockSpec((1, 1, cols), lambda p, s: (p, 0, 0)),
                scratch_shapes=[pltpu.VMEM((row_tile, cols), jnp.float32)],
            ),
            compiler_params=pltpu.CompilerParams(
                dimension_semantics=("parallel", "arbitrary"),
                vmem_limit_bytes=vmem_limit),
            cost_estimate=pl.CostEstimate(
                flops=5 * n, transcendentals=0,
                bytes_accessed=in_bytes + 4 * n_parallel * cols),
        )(x1p, x2p, tp)

        result = jnp.sum(partials)          # tiny (<= 2*cols element) final add
        if reduction == "mean":
            result = result / float(n)      # true (unpadded) element count
        return result.astype(out_dtype)

    elif reduction == "none":
        kernel = functools.partial(_mrl_elementwise_kernel, margin=float(margin))
        out = pl.pallas_call(
            kernel,
            out_shape=jax.ShapeDtypeStruct((rows, cols), out_dtype),
            grid_spec=pltpu.PrefetchScalarGridSpec(
                num_scalar_prefetch=0,
                grid=(n_tiles,),
                in_specs=[
                    pl.BlockSpec((row_tile, cols), lambda i: (i, 0)),
                    pl.BlockSpec((row_tile, cols), lambda i: (i, 0)),
                    pl.BlockSpec((row_tile, cols), lambda i: (i, 0)),
                ],
                out_specs=pl.BlockSpec((row_tile, cols), lambda i: (i, 0)),
            ),
            compiler_params=pltpu.CompilerParams(
                dimension_semantics=("parallel",),
                vmem_limit_bytes=vmem_limit),
            cost_estimate=pl.CostEstimate(
                flops=4 * n, transcendentals=0,
                bytes_accessed=in_bytes + n * jnp.dtype(out_dtype).itemsize),
        )(x1p, x2p, tp)
        if needs_pad:
            return out.reshape(-1)[:n].reshape(orig_shape)
        return out.reshape(orig_shape)      # copy-free: rows * cols == n

    else:
        raise ValueError(f"unknown reduction: {reduction}")


# ---------------------------------------------------------------------------
# Demo / self-test
# ---------------------------------------------------------------------------
if __name__ == "__main__":
    key = jax.random.PRNGKey(0)

    def reference(x1, x2, t, margin):
        return jnp.maximum(-t * (x1 - x2) + margin, 0.0)

    # --- Test 1: small 4-D shape (batch=2, channels=4, 16x16 spatial) --------
    k1, k2, k3, key = jax.random.split(key, 4)
    shape = (2, 4, 16, 16)
    margin = 0.5
    x1 = jax.random.normal(k1, shape, dtype=jnp.float32)
    x2 = jax.random.normal(k2, shape, dtype=jnp.float32)
    target = jnp.where(jax.random.bernoulli(k3, 0.5, shape), 1.0, -1.0).astype(jnp.float32)

    ref = reference(x1, x2, target, margin)
    out_mean = jax.block_until_ready(
        margin_ranking_loss(x1, x2, target, margin=margin, reduction="mean"))
    out_sum = jax.block_until_ready(
        margin_ranking_loss(x1, x2, target, margin=margin, reduction="sum"))
    out_none = jax.block_until_ready(
        margin_ranking_loss(x1, x2, target, margin=margin, reduction="none"))

    assert jnp.allclose(out_mean, ref.mean(), rtol=1e-5, atol=1e-5), (out_mean, ref.mean())
    assert jnp.allclose(out_sum, ref.sum(), rtol=1e-5, atol=1e-3), (out_sum, ref.sum())
    assert out_none.shape == shape and out_none.dtype == x1.dtype
    assert jnp.allclose(out_none, ref, rtol=1e-6, atol=1e-6)

    # --- Test 2: odd small shape (ragged-tail pad fallback path) -------------
    k1, k2, k3, key = jax.random.split(key, 4)
    shape2 = (3, 5, 7)
    b1 = jax.random.normal(k1, shape2, dtype=jnp.float32)
    b2 = jax.random.normal(k2, shape2, dtype=jnp.float32)
    t2 = jnp.where(jax.random.bernoulli(k3, 0.5, shape2), 1.0, -1.0).astype(jnp.float32)

    ref2 = reference(b1, b2, t2, 0.0)
    out_mean2 = jax.block_until_ready(
        margin_ranking_loss(b1, b2, t2, margin=0.0, reduction="mean"))
    out_sum2 = jax.block_until_ready(
        margin_ranking_loss(b1, b2, t2, margin=0.0, reduction="sum"))
    out_none2 = jax.block_until_ready(
        margin_ranking_loss(b1, b2, t2, margin=0.0, reduction="none"))
    assert jnp.allclose(out_mean2, ref2.mean(), rtol=1e-5, atol=1e-6)
    assert jnp.allclose(out_sum2, ref2.sum(), rtol=1e-5, atol=1e-4)
    assert out_none2.shape == shape2
    assert jnp.allclose(out_none2, ref2, rtol=1e-6, atol=1e-6)

    # --- Test 3: multi-tile shape with a partial last row-tile ---------------
    # (exercises the in-kernel row mask + clipped partial-block DMAs + the
    #  odd-tile-count / clamped index_map path on 2-TensorCore chips)
    k1, k2, k3, key = jax.random.split(key, 4)
    shape3 = (3072, 512)
    margin3 = 0.1
    a1 = jax.random.normal(k1, shape3, dtype=jnp.float32)
    a2 = jax.random.normal(k2, shape3, dtype=jnp.float32)
    t3 = jnp.where(jax.random.bernoulli(k3, 0.5, shape3), 1.0, -1.0).astype(jnp.float32)

    ref3 = reference(a1, a2, t3, margin3)
    out_mean3 = jax.block_until_ready(
        margin_ranking_loss(a1, a2, t3, margin=margin3, reduction="mean"))
    out_sum3 = jax.block_until_ready(
        margin_ranking_loss(a1, a2, t3, margin=margin3, reduction="sum"))
    out_none3 = jax.block_until_ready(
        margin_ranking_loss(a1, a2, t3, margin=margin3, reduction="none"))
    assert jnp.allclose(out_mean3, ref3.mean(), rtol=1e-4, atol=1e-6), (out_mean3, ref3.mean())
    assert jnp.allclose(out_sum3, ref3.sum(), rtol=1e-4, atol=1e-1), (out_sum3, ref3.sum())
    assert out_none3.shape == shape3
    assert jnp.allclose(out_none3, ref3, rtol=1e-6, atol=1e-6)

    print("KERNEL_OK")
</pallas_src>

<mosaic_0001>
module attributes {stable_mosaic.version = 11 : i64} {
  func.func @_mrl_reduce_kernel(%arg0: i32, %arg1: i32, %arg2: memref<4x512xf32, #tpu.memory_space<vmem>>, %arg3: memref<4x512xf32, #tpu.memory_space<vmem>>, %arg4: memref<4x512xf32, #tpu.memory_space<vmem>>, %arg5: memref<1x1x512xf32, #tpu.memory_space<vmem>>, %arg6: memref<4x512xf32, #tpu.memory_space<vmem>>) attributes {dimension_semantics = [#tpu.dimension_semantics<parallel>, #tpu.dimension_semantics<arbitrary>], iteration_bounds = array<i64: 1, 1>, scalar_prefetch = 0 : i64, scratch_operands = 1 : i64, tpu.core_type = #tpu.core_type<tc>, window_params = [{transform_indices = @transform_0, window_bounds = array<i64: 4, 512>}, {transform_indices = @transform_1, window_bounds = array<i64: 4, 512>}, {transform_indices = @transform_2, window_bounds = array<i64: 4, 512>}, {transform_indices = @transform_3, window_bounds = array<i64: 1, 1, 512>}]} {
    %c0_i32 = arith.constant 0 : i32
    %0 = arith.cmpi eq, %arg1, %c0_i32 : i32
    %1 = arith.extui %0 : i1 to i32
    %c0_i32_0 = arith.constant 0 : i32
    %2 = arith.cmpi ne, %1, %c0_i32_0 : i32
    scf.if %2 {
      %cst_13 = arith.constant 0.000000e+00 : f32
      %25 = vector.broadcast %cst_13 : f32 to vector<4x512xf32>
      %c0_14 = arith.constant 0 : index
      %c0_15 = arith.constant 0 : index
      %26 = vector.load %arg6[%c0_14, %c0_15] : memref<4x512xf32, #tpu.memory_space<vmem>>, vector<4x512xf32>
      tpu.vector_store %arg6[%c0_14, %c0_15], %25 {strides = array<i32>} : memref<4x512xf32, #tpu.memory_space<vmem>>, vector<4x512xf32>,
    } else {
    }
    %c0 = arith.constant 0 : index
    %c0_1 = arith.constant 0 : index
    %3 = vector.load %arg2[%c0, %c0_1] : memref<4x512xf32, #tpu.memory_space<vmem>>, vector<4x512xf32>
    %c0_2 = arith.constant 0 : index
    %c0_3 = arith.constant 0 : index
    %4 = vector.load %arg3[%c0_2, %c0_3] : memref<4x512xf32, #tpu.memory_space<vmem>>, vector<4x512xf32>
    %c0_4 = arith.constant 0 : index
    %c0_5 = arith.constant 0 : index
    %5 = vector.load %arg4[%c0_4, %c0_5] : memref<4x512xf32, #tpu.memory_space<vmem>>, vector<4x512xf32>
    %6 = arith.subf %3, %4 : vector<4x512xf32>
    %7 = arith.mulf %5, %6 : vector<4x512xf32>
    %cst = arith.constant 5.000000e-01 : f32
    %8 = vector.broadcast %cst : f32 to vector<4x512xf32>
    %9 = arith.subf %8, %7 : vector<4x512xf32>
    %cst_6 = arith.constant 0.000000e+00 : f32
    %10 = vector.broadcast %cst_6 : f32 to vector<4x512xf32>
    %11 = arith.maximumf %9, %10 : vector<4x512xf32>
    %c1_i32 = arith.constant 1 : i32
    %12 = arith.muli %arg0, %c1_i32 : i32
    %13 = arith.addi %12, %arg1 : i32
    %c4_i32 = arith.constant 4 : i32
    %14 = arith.muli %13, %c4_i32 : i32
    %c4_i32_7 = arith.constant 4 : i32
    %15 = arith.addi %14, %c4_i32_7 : i32
    %c4_i32_8 = arith.constant 4 : i32
    %16 = arith.cmpi sle, %15, %c4_i32_8 : i32
    %17 = arith.extui %16 : i1 to i32
    %c0_i32_9 = arith.constant 0 : i32
    %18 = arith.cmpi ne, %17, %c0_i32_9 : i32
    scf.if %18 {
      %c0_13 = arith.constant 0 : index
      %c0_14 = arith.constant 0 : index
      %25 = vector.load %arg6[%c0_13, %c0_14] : memref<4x512xf32, #tpu.memory_space<vmem>>, vector<4x512xf32>
      %26 = arith.addf %25, %11 : vector<4x512xf32>
      %c0_15 = arith.constant 0 : index
      %c0_16 = arith.constant 0 : index
      %27 = vector.load %arg6[%c0_15, %c0_16] : memref<4x512xf32, #tpu.memory_space<vmem>>, vector<4x512xf32>
      tpu.vector_store %arg6[%c0_15, %c0_16], %26 {strides = array<i32>} : memref<4x512xf32, #tpu.memory_space<vmem>>, vector<4x512xf32>,
    } else {
    }
    %true = arith.constant true
    %19 = arith.xori %16, %true : i1
    %20 = arith.extui %19 : i1 to i32
    %c0_i32_10 = arith.constant 0 : i32
    %21 = arith.cmpi ne, %20, %c0_i32_10 : i32
    scf.if %21 {
      %25 = tpu.iota {dimensions = array<i32: 0>} : vector<4x512xi32>
      %26 = vector.broadcast %14 : i32 to vector<4x512xi32>
      %27 = arith.addi %26, %25 : vector<4x512xi32>
      %c0_13 = arith.constant 0 : index
      %c0_14 = arith.constant 0 : index
      %28 = vector.load %arg6[%c0_13, %c0_14] : memref<4x512xf32, #tpu.memory_space<vmem>>, vector<4x512xf32>
      %c4_i32_15 = arith.constant 4 : i32
      %29 = vector.broadcast %c4_i32_15 : i32 to vector<4x512xi32>
      %30 = arith.cmpi slt, %27, %29 : vector<4x512xi32>
      %cst_16 = arith.constant 0.000000e+00 : f32
      %31 = vector.broadcast %cst_16 : f32 to vector<4x512xf32>
      %32 = arith.select %30, %11, %31 : vector<4x512xi1>, vector<4x512xf32>
      %33 = arith.addf %28, %32 : vector<4x512xf32>
      %c0_17 = arith.constant 0 : index
      %c0_18 = arith.constant 0 : index
      %34 = vector.load %arg6[%c0_17, %c0_18] : memref<4x512xf32, #tpu.memory_space<vmem>>, vector<4x512xf32>
      tpu.vector_store %arg6[%c0_17, %c0_18], %33 {strides = array<i32>} : memref<4x512xf32, #tpu.memory_space<vmem>>, vector<4x512xf32>,
    } else {
    }
    %c0_i32_11 = arith.constant 0 : i32
    %22 = arith.cmpi eq, %arg1, %c0_i32_11 : i32
    %23 = arith.extui %22 : i1 to i32
    %c0_i32_12 = arith.constant 0 : i32
    %24 = arith.cmpi ne, %23, %c0_i32_12 : i32
    scf.if %24 {
      %c0_13 = arith.constant 0 : index
      %c0_14 = arith.constant 0 : index
      %25 = vector.load %arg6[%c0_13, %c0_14] : memref<4x512xf32, #tpu.memory_space<vmem>>, vector<4x512xf32>
      %cst_15 = arith.constant dense<0.000000e+00> : vector<512xf32>
      %26 = vector.multi_reduction <add>, %25, %cst_15 [0] : vector<4x512xf32> to vector<512xf32>
      %27 = vector.shape_cast %26 : vector<512xf32> to vector<1x1x512xf32>
      %c0_16 = arith.constant 0 : index
      %c0_17 = arith.constant 0 : index
      %c0_18 = arith.constant 0 : index
      %28 = vector.load %arg5[%c0_16, %c0_17, %c0_18] : memref<1x1x512xf32, #tpu.memory_space<vmem>>, vector<1x1x512xf32>
      tpu.vector_store %arg5[%c0_16, %c0_17, %c0_18], %27 {strides = array<i32>} : memref<1x1x512xf32, #tpu.memory_space<vmem>>, vector<1x1x512xf32>,
    } else {
    }
    return
  }
  func.func @transform_0(%arg0: i32, %arg1: i32) -> (i32, i32) {
    %c1_i32 = arith.constant 1 : i32
    %0 = arith.muli %arg0, %c1_i32 : i32
    %1 = arith.addi %0, %arg1 : i32
    %c0_i32 = arith.constant 0 : i32
    %c0_i32_0 = arith.constant 0 : i32
    return %1, %c0_i32 : i32, i32
  }
  func.func @transform_1(%arg0: i32, %arg1: i32) -> (i32, i32) {
    %c1_i32 = arith.constant 1 : i32
    %0 = arith.muli %arg0, %c1_i32 : i32
    %1 = arith.addi %0, %arg1 : i32
    %c0_i32 = arith.constant 0 : i32
    %c0_i32_0 = arith.constant 0 : i32
    return %1, %c0_i32 : i32, i32
  }
  func.func @transform_2(%arg0: i32, %arg1: i32) -> (i32, i32) {
    %c1_i32 = arith.constant 1 : i32
    %0 = arith.muli %arg0, %c1_i32 : i32
    %1 = arith.addi %0, %arg1 : i32
    %c0_i32 = arith.constant 0 : i32
    %c0_i32_0 = arith.constant 0 : i32
    return %1, %c0_i32 : i32, i32
  }
  func.func @transform_3(%arg0: i32, %arg1: i32) -> (i32, i32, i32) {
    %c0_i32 = arith.constant 0 : i32
    %c0_i32_0 = arith.constant 0 : i32
    %c0_i32_1 = arith.constant 0 : i32
    return %arg0, %c0_i32, %c0_i32_0 : i32, i32, i32
  }
}

</mosaic_0001>

<llo_original>
// kernel: tpu_custom_call.1
$region0: #{tpu_custom_call.1}
  #allocation0 [shape = 'u32[]', space=smem, size = 0x4, offset = 0x4, fixed_abs, tag = 'smem constant byte address 0x4 - core index']
  #allocation1 [shape = 'u32[72,128]{1,0:T(1,128)}', space=vmem, size = 0x9000, scoped, tag = 'internal scratch']
  #allocation2 [shape = 'f32[4,512]{1,0:T(4,128)}', space=vmem, size = 0x2000, scoped, tag = 'scratch operand']
  %s0 = inlined_call_operand.hbm [shape: f32[4,512], index: 0, kind: input, shape index: {}]
  %s1 = inlined_call_operand.hbm [shape: f32[4,512], index: 1, kind: input, shape index: {}]
  %s2 = inlined_call_operand.hbm [shape: f32[4,512], index: 2, kind: input, shape index: {}]
  %s3 = inlined_call_operand.hbm [shape: f32[1,1,512], index: 3, kind: output, shape index: {}]
  %s4 = sld [smem:[#allocation0]]
  $region50: #{tpu_custom_call.1} parent=0
    _
  %s6 = ssub.s32 1, %s4
  %s7 = scalar_select 0, %s6, %s4
  $region1: #{tpu_custom_call.1} parent=0
    #allocation3 [shape = 'u8[8192]{0}', space=vmem, size = 0x2000, scoped, tag = 'input window, operand 0, single buffered']
    #allocation4 [shape = 's32[1]{0}', space=sflag, size = 0x4, scoped, tag = 'scoped memory for tpu_custom_call.1']
    #allocation5 [shape = 's32[1]{0}', space=sflag, size = 0x4, scoped, tag = 'scoped memory for tpu_custom_call.1']
    #allocation6 [shape = 'u8[8192]{0}', space=vmem, size = 0x2000, scoped, tag = 'input window, operand 1, single buffered']
    #allocation7 [shape = 's32[1]{0}', space=sflag, size = 0x4, scoped, tag = 'scoped memory for tpu_custom_call.1']
    #allocation8 [shape = 'u8[8192]{0}', space=vmem, size = 0x2000, scoped, tag = 'input window, operand 2, single buffered']
    #allocation9 [shape = 'u8[2048]{0}', space=vmem, size = 0x800, scoped, tag = 'output window, operand 0, single buffered']
    %8 = vsyncpa [#allocation4], 0
    %9 = vsyncpa [#allocation7], 0
    %10 = vsyncpa [#allocation5], 0
    // Predicated region
    $region2: #{tpu_custom_call.1} parent=1 // pred_check
      _
    $region3: #{tpu_custom_call.1} parent=1 // pred_check_branch
      %12 = sbr.rel (0) target = $region5
    $region4: #{tpu_custom_call.1} parent=1 // pred_region
      %s13 = sadd.s32 0, 0
      %15 = vsyncadd [#allocation4], 0
      %s16 = smul.addr %s13, 4
      %s17 = smul.addr %s16, 4
      %s18 = scalar_lea.hbm %s0, %s17
      %s20 = sshll.u32 %s18, 4
      %s21 = int_to_ptr.hbm [resolvable:$true] %s20
      %s22 = sshll.u32 [#allocation3], 4
      %s23 = int_to_ptr.vmem [resolvable:$true] %s22
      %25 = dma.hbm_to_vmem [thread:$0]  %s21, 256, %s23, [#allocation4]
    $region5: #{tpu_custom_call.1} parent=1 // pred_fallthru
      _
    // Predicated region
    $region6: #{tpu_custom_call.1} parent=1 // pred_check
      _
    $region7: #{tpu_custom_call.1} parent=1 // pred_check_branch
      %27 = sbr.rel (0) target = $region9
    $region8: #{tpu_custom_call.1} parent=1 // pred_region
      %s28 = sadd.s32 0, 0
      %30 = vsyncadd [#allocation7], 0
      %s31 = smul.addr %s28, 4
      %s32 = smul.addr %s31, 4
      %s33 = scalar_lea.hbm %s1, %s32
      %s35 = sshll.u32 %s33, 4
      %s36 = int_to_ptr.hbm [resolvable:$true] %s35
      %s37 = sshll.u32 [#allocation6], 4
      %s38 = int_to_ptr.vmem [resolvable:$true] %s37
      %40 = dma.hbm_to_vmem [thread:$0]  %s36, 256, %s38, [#allocation7]
    $region9: #{tpu_custom_call.1} parent=1 // pred_fallthru
      _
    // Predicated region
    $region10: #{tpu_custom_call.1} parent=1 // pred_check
      _
    $region11: #{tpu_custom_call.1} parent=1 // pred_check_branch
      %42 = sbr.rel (0) target = $region13
    $region12: #{tpu_custom_call.1} parent=1 // pred_region
      %s43 = sadd.s32 0, 0
      %45 = vsyncadd [#allocation7], 0
      %s46 = smul.addr %s43, 4
      %s47 = smul.addr %s46, 4
      %s48 = scalar_lea.hbm %s2, %s47
      %s50 = sshll.u32 %s48, 4
      %s51 = int_to_ptr.hbm [resolvable:$true] %s50
      %s52 = sshll.u32 [#allocation8], 4
      %s53 = int_to_ptr.vmem [resolvable:$true] %s52
      %55 = dma.hbm_to_vmem [thread:$0]  %s51, 256, %s53, [#allocation7]
    $region13: #{tpu_custom_call.1} parent=1 // pred_fallthru
      _
    // Predicated region
    $region14: #{tpu_custom_call.1} parent=1 // pred_check
      _
    $region15: #{tpu_custom_call.1} parent=1 // pred_check_branch
      %57 = sbr.rel (0) target = $region17
    $region16: #{tpu_custom_call.1} parent=1 // pred_region
      %59 = dma.done [#allocation4], 256
    $region17: #{tpu_custom_call.1} parent=1 // pred_fallthru
      _
    // Predicated region
    $region18: #{tpu_custom_call.1} parent=1 // pred_check
      _
    $region19: #{tpu_custom_call.1} parent=1 // pred_check_branch
      %61 = sbr.rel (0) target = $region21
    $region20: #{tpu_custom_call.1} parent=1 // pred_region
      %63 = dma.done [#allocation7], 256
    $region21: #{tpu_custom_call.1} parent=1 // pred_fallthru
      _
    // Predicated region
    $region22: #{tpu_custom_call.1} parent=1 // pred_check
      _
    $region23: #{tpu_custom_call.1} parent=1 // pred_check_branch
      %65 = sbr.rel (0) target = $region25
    $region24: #{tpu_custom_call.1} parent=1 // pred_region
      %67 = dma.done [#allocation7], 256
    $region25: #{tpu_custom_call.1} parent=1 // pred_fallthru
      _
    %s68 = sadd.s32 0, 0
    %s69 = sadd.s32 0, 0
    %s70 = sadd.s32 0, 0
    %p71 = scmp.eq.s32.totalorder 0, 0
    // Predicated region
    $region26: #{tpu_custom_call.1} parent=1 // pred_check
      %p72 = pneg %p71
    $region27: #{tpu_custom_call.1} parent=1 // pred_check_branch
      %74 = sbr.rel (%p72) target = $region29
    $region28: #{tpu_custom_call.1} parent=1 // pred_region
      %75 = vst [vmem:[#allocation2] sm:$0xff] 0.0
      %76 = vst [vmem:[#allocation2 + $0x8] sm:$0xff] 0.0
    $region29: #{tpu_custom_call.1} parent=1 // pred_fallthru
      _
    %v77 = vld [vmem:[#allocation3] sm:$0xff]
    %v78 = vld [vmem:[#allocation3 + $0x8] sm:$0xff]
    %v79 = vld [vmem:[#allocation6] sm:$0xff]
    %v80 = vld [vmem:[#allocation6 + $0x8] sm:$0xff]
    %v81 = vld [vmem:[#allocation8] sm:$0xff]
    %v82 = vld [vmem:[#allocation8 + $0x8] sm:$0xff]
    %v83 = vsub.f32 %v77, %v79
    %v84 = vsub.f32 %v78, %v80
    %v85 = vmul.f32 %v81, %v83
    %v86 = vmul.f32 %v82, %v84
    %v87 = vsub.f32 0.5, %v85
    %v88 = vsub.f32 0.5, %v86
    %v89 = vmax.f32 %v87, 0.0
    %v90 = vmax.f32 %v88, 0.0
    %s91 = sadd.s32 0, 0
    %s92 = smul.u32 %s91, 4
    %s93 = sadd.s32 %s92, 4
    %p94 = scmp.le.s32.totalorder %s93, 4
    // Predicated region
    $region30: #{tpu_custom_call.1} parent=1 // pred_check
      %p95 = pneg %p94
    $region31: #{tpu_custom_call.1} parent=1 // pred_check_branch
      %97 = sbr.rel (%p95) target = $region33
    $region32: #{tpu_custom_call.1} parent=1 // pred_region
      %v98 = vld [vmem:[#allocation2] sm:$0xff]
      %v99 = vld [vmem:[#allocation2 + $0x8] sm:$0xff]
      %v100 = vadd.f32 %v98, %v89
      %v101 = vadd.f32 %v99, %v90
      %102 = vst [vmem:[#allocation2] sm:$0xff] %v100
      %103 = vst [vmem:[#allocation2 + $0x8] sm:$0xff] %v101
    $region33: #{tpu_custom_call.1} parent=1 // pred_fallthru
      _
    %p104 = scmp.gt.s32.totalorder %s93, 4
    // Predicated region
    $region34: #{tpu_custom_call.1} parent=1 // pred_check
      %p105 = pneg %p104
    $region35: #{tpu_custom_call.1} parent=1 // pred_check_branch
      %107 = sbr.rel (%p105) target = $region37
    $region36: #{tpu_custom_call.1} parent=1 // pred_region
      %v108 = vlaneseq
      %v109 = vshrl.u32 %v108, 7
      %v110 = vstv %s92
      %v111 = vadd.s32 %v110, %v109
      %v112 = vld [vmem:[#allocation2] sm:$0xff]
      %v113 = vld [vmem:[#allocation2 + $0x8] sm:$0xff]
      %vm114 = vcmp.lt.s32.totalorder %v111, 4
      %117 = vst [vmem:[#allocation1] ss:$2 sm:$0xff] %v89
      %s118 = scalar_lea.vmem [#allocation1], 16
      %119 = vst [vmem:[%s118] ss:$2 sm:$0xff] %v90
      %v120 = vld.sshfl [vmem:[#allocation1] sm:$0xff pattern:$0x75316420]
      %v121 = vld.sshfl [vmem:[#allocation1 + $0x8] sm:$0xff pattern:$0x75316420]
      %v122 = vld.sshfl [vmem:[#allocation1 + $0x10] sm:$0xff pattern:$0x75316420]
      %v123 = vld.sshfl [vmem:[#allocation1 + $0x18] sm:$0xff pattern:$0x75316420]
      %v128 = vsel %vm114, %v120, 0.0
      %v129 = vsel %vm114, %v121, 0.0
      %v130 = vsel %vm114, %v122, 0.0
      %v131 = vsel %vm114, %v123, 0.0
      %v136 = vrot.slane %v129, 4
      %v137 = vrot.slane %v131, 4
      %vm138 = vcmask 1043456
      %v139 = vsel %vm138, %v128, %v136
      %v140 = vsel %vm138, %v130, %v137
      %v143 = vadd.f32 %v112, %v139
      %v144 = vadd.f32 %v113, %v140
      %145 = vst [vmem:[#allocation2] sm:$0xff] %v143
      %146 = vst [vmem:[#allocation2 + $0x8] sm:$0xff] %v144
    $region37: #{tpu_custom_call.1} parent=1 // pred_fallthru
      _
    // Predicated region
    $region38: #{tpu_custom_call.1} parent=1 // pred_check
      %p147 = pneg %p71
    $region39: #{tpu_custom_call.1} parent=1 // pred_check_branch
      %149 = sbr.rel (%p147) target = $region41
    $region40: #{tpu_custom_call.1} parent=1 // pred_region
      %v150 = vld [vmem:[#allocation2] sm:$0xff]
      %v151 = vld [vmem:[#allocation2 + $0x8] sm:$0xff]
      %154 = vst [vmem:[#allocation1] ss:$2 sm:$0xff] %v150
      %s155 = scalar_lea.vmem [#allocation1], 16
      %156 = vst [vmem:[%s155] ss:$2 sm:$0xff] %v151
      %v157 = vld.sshfl [vmem:[#allocation1] sm:$0xff pattern:$0x75316420]
      %v158 = vld.sshfl [vmem:[#allocation1 + $0x8] sm:$0xff pattern:$0x75316420]
      %v159 = vld.sshfl [vmem:[#allocation1 + $0x10] sm:$0xff pattern:$0x75316420]
      %v160 = vld.sshfl [vmem:[#allocation1 + $0x18] sm:$0xff pattern:$0x75316420]
      %vm165 = vcmask 1043456
      %v166 = vsel %vm165, %v157, 0.0
      %v167 = vrot.slane %v166, 4
      %v168 = vadd.f32 %v166, %v167
      %v169 = vrot.slane %v168, 2
      %v170 = vadd.f32 %v168, %v169
      %v171 = vrot.slane %v170, 1
      %v172 = vadd.f32 %v170, %v171
      %v173 = vsel %vm165, %v158, 0.0
      %v174 = vrot.slane %v173, 4
      %v175 = vadd.f32 %v173, %v174
      %v176 = vrot.slane %v175, 2
      %v177 = vadd.f32 %v175, %v176
      %v178 = vrot.slane %v177, 1
      %v179 = vadd.f32 %v177, %v178
      %v180 = vsel %vm165, %v159, 0.0
      %v181 = vrot.slane %v180, 4
      %v182 = vadd.f32 %v180, %v181
      %v183 = vrot.slane %v182, 2
      %v184 = vadd.f32 %v182, %v183
      %v185 = vrot.slane %v184, 1
      %v186 = vadd.f32 %v184, %v185
      %v187 = vsel %vm165, %v160, 0.0
      %v188 = vrot.slane %v187, 4
      %v189 = vadd.f32 %v187, %v188
      %v190 = vrot.slane %v189, 2
      %v191 = vadd.f32 %v189, %v190
      %v192 = vrot.slane %v191, 1
      %v193 = vadd.f32 %v191, %v192
      %v198 = vrot.slane %v179, 7
      %v199 = vrot.slane %v186, 6
      %v200 = vrot.slane %v193, 5
      %vm201 = vcmask 1040384
      %v202 = vsel %vm201, %v172, %v198
      %vm203 = vcmask 1042434
      %v204 = vsel %vm203, %v199, %v200
      %vm205 = vcmask 1041408
      %v206 = vsel %vm205, %v202, %v204
      %v208 = vlaneseq
      %vm209 = vcmp.ge.s32.totalorder %v208, 0
      %vm210 = vcmp.lt.s32.totalorder %v208, 512
      %vm211 = vmand %vm209, %vm210
      %212 = vst.msk [vmem:[#allocation9] sm:$0xf] %vm211, %v206
    $region41: #{tpu_custom_call.1} parent=1 // pred_fallthru
      _
    // Predicated region
    $region42: #{tpu_custom_call.1} parent=1 // pred_check
      _
    $region43: #{tpu_custom_call.1} parent=1 // pred_check_branch
      %214 = sbr.rel (0) target = $region45
    $region44: #{tpu_custom_call.1} parent=1 // pred_region
      %216 = vsyncadd [#allocation5], 0
      %s218 = sshll.u32 [#allocation9], 4
      %s219 = int_to_ptr.vmem [resolvable:$true] %s218
      %s220 = sshll.u32 %s3, 4
      %s221 = int_to_ptr.hbm [resolvable:$true] %s220
      %223 = dma.vmem_to_hbm [thread:$0]  %s219, 64, %s221, [#allocation5]
    $region45: #{tpu_custom_call.1} parent=1 // pred_fallthru
      _
    // Predicated region
    $region46: #{tpu_custom_call.1} parent=1 // pred_check
      _
    $region47: #{tpu_custom_call.1} parent=1 // pred_check_branch
      %225 = sbr.rel (0) target = $region49
    $region48: #{tpu_custom_call.1} parent=1 // pred_region
      %227 = dma.done [#allocation5], 64
    $region49: #{tpu_custom_call.1} parent=1 // pred_fallthru
      _
    %228 = vsyncpa [#allocation4], 1
    %229 = vsyncpa [#allocation7], 1
    %230 = vsyncpa [#allocation5], 1

</llo_original>
